<compile_context>
chip_gen: v7x
topology: tpu7x:2x2x1
jax: 0.10.0
libtpu: 0.0.40
codegen_flags: <defaults>
</compile_context>

<pallas_src>
import jax
import jax.numpy as jnp
from jax.experimental import pallas as pl
from jax.experimental.pallas import tpu as pltpu

EPS = 1e-5


def _elu(x):
    # ELU(alpha=1): x if x > 0 else exp(x) - 1 (clamp exp arg for safety)
    return jnp.where(x > 0.0, x, jnp.exp(jnp.minimum(x, 0.0)) - 1.0)


def film_conv_kernel(x_ref, z_ref, wblk_ref, wfilm_ref, bfilm_ref, bn_ref,
                     fold_ref, expand_ref, o_ref):
    N, H, WC2 = o_ref.shape            # (N, H, W*C2) lane-dense output slab
    C2 = fold_ref.shape[1]
    Wcols = WC2 // C2
    M = N * H * Wcols                  # number of (n, h, w) positions per channel

    # ---- 1x1 conv for every spatial column at once: one MXU push, K = W*C1 ----
    x = x_ref[...]                                                       # (N*H, W*C1)
    h = jnp.dot(x, wblk_ref[...], preferred_element_type=jnp.float32)    # (N*H, W*C2)

    # ---- training-mode BatchNorm stats: single-pass sum / sumsq, fold lanes->channels ----
    s1 = jnp.sum(h, axis=0, keepdims=True)                               # (1, W*C2)
    s2 = jnp.sum(h * h, axis=0, keepdims=True)                           # (1, W*C2)
    stats = jnp.dot(jnp.concatenate([s1, s2], axis=0), fold_ref[...],
                    preferred_element_type=jnp.float32)                  # (2, C2)
    mean = stats[0:1, :] * (1.0 / M)                                     # (1, C2)
    var = stats[1:2, :] * (1.0 / M) - mean * mean                        # biased variance
    inv = jax.lax.rsqrt(var + EPS)                                       # EUP slot
    scale_c = bn_ref[0:1, :] * inv                                       # (1, C2)
    shift_c = bn_ref[1:2, :] - mean * scale_c                            # (1, C2)

    # ---- FiLM: fused gamma/beta linear on z (one small matmul) ----
    film = jnp.dot(z_ref[...], wfilm_ref[...],
                   preferred_element_type=jnp.float32) + bfilm_ref[...]  # (N, 2*C2)
    gamma = film[:, :C2]                                                 # (N, C2)
    beta = film[:, C2:]                                                  # (N, C2)

    # ---- fuse BN affine with FiLM into one per-(sample, channel) affine: y = A*h + B ----
    a_c = gamma * scale_c                                                # (N, C2)
    b_c = gamma * shift_c + beta                                         # (N, C2)
    ab = jnp.dot(jnp.concatenate([a_c, b_c], axis=0), expand_ref[...],
                 preferred_element_type=jnp.float32)                     # (2N, W*C2)
    a_row = ab[:N, :][:, None, :]                                        # (N, 1, W*C2)
    b_row = ab[N:, :][:, None, :]

    y = _elu(a_row * h.reshape(N, H, WC2) + b_row)                       # single FMA + ELU pass
    o_ref[...] = y.astype(o_ref.dtype)


def film_conv_forward(x_nchw, z, p):
    """x_nchw: (N, C1, H, W) f32, z: (N, zdim) f32 -> (N, C2, H, W) f32."""
    N, C1, H, W = x_nchw.shape
    C2 = p["w_conv"].shape[1]
    f32 = jnp.float32

    # --- layout plumbing in the wrapper (lane-dense slabs for the kernel) ---
    x_slab = jnp.transpose(x_nchw, (0, 2, 3, 1)).reshape(N * H, W * C1)

    # block-diagonal conv weight: one matmul covers the 1x1 conv for all W columns
    w_blk = jnp.kron(jnp.eye(W, dtype=f32), p["w_conv"].astype(f32))     # (W*C1, W*C2)
    # fused FiLM linear weights / biases
    w_film = jnp.concatenate([p["wg"], p["wb"]], axis=1)                 # (zdim, 2*C2)
    b_film = jnp.concatenate([p["bg"], p["bb"]], axis=0).reshape(1, 2 * C2)
    # packed BN affine params (one DMA instead of several tiny ones)
    bn_aff = jnp.stack([p["bn_g"], p["bn_b"]], axis=0)                   # (2, C2)
    # constant lane<->channel fold / expand matrices (keep in-kernel math matmul-only)
    fold = jnp.kron(jnp.ones((W, 1), f32), jnp.eye(C2, dtype=f32))       # (W*C2, C2)
    expand = fold.T                                                      # (C2, W*C2)

    vmem = pl.BlockSpec(memory_space=pltpu.MemorySpace.VMEM)
    out = pl.pallas_call(
        film_conv_kernel,
        out_shape=jax.ShapeDtypeStruct((N, H, W * C2), x_nchw.dtype),
        in_specs=[vmem] * 8,
        out_specs=vmem,
    )(x_slab, z, w_blk, w_film, b_film, bn_aff, fold, expand)

    # (N, H, W*C2) slab -> NCHW
    return jnp.transpose(out.reshape(N, H, W, C2), (0, 3, 1, 2))


# ---------------- pure-JAX reference (for correctness check) ----------------
def film_conv_ref(x_nchw, z, p):
    x = jnp.transpose(x_nchw, (0, 2, 3, 1)).astype(jnp.float32)          # NHWC
    h = jnp.einsum('nhwc,cd->nhwd', x, p["w_conv"],
                   precision=jax.lax.Precision.HIGHEST)
    mean = jnp.mean(h, axis=(0, 1, 2), keepdims=True)
    var = jnp.mean((h - mean) ** 2, axis=(0, 1, 2), keepdims=True)
    h = ((h - mean) * jax.lax.rsqrt(var + EPS)
         * p["bn_g"].reshape(1, 1, 1, -1) + p["bn_b"].reshape(1, 1, 1, -1))
    gamma = z @ p["wg"] + p["bg"]                                        # (N, C2)
    beta = z @ p["wb"] + p["bb"]                                         # (N, C2)
    h = gamma[:, None, None, :] * h + beta[:, None, None, :]
    h = jnp.where(h > 0.0, h, jnp.exp(jnp.minimum(h, 0.0)) - 1.0)
    return jnp.transpose(h, (0, 3, 1, 2))


def make_params(key, c1, c2, zdim):
    ks = jax.random.split(key, 8)
    return {
        # conv weight stored (C1, C2) (PyTorch (C2, C1, 1, 1) squeezed + transposed)
        "w_conv": 0.3 * jax.random.normal(ks[0], (c1, c2), jnp.float32),
        "bn_g": 1.0 + 0.1 * jax.random.normal(ks[1], (c2,), jnp.float32),
        "bn_b": 0.1 * jax.random.normal(ks[2], (c2,), jnp.float32),
        # FiLM linears stored (zdim, C2) (PyTorch (C2, zdim) transposed)
        "wg": 0.05 * jax.random.normal(ks[3], (zdim, c2), jnp.float32),
        "bg": 1.0 + 0.05 * jax.random.normal(ks[4], (c2,), jnp.float32),
        "wb": 0.05 * jax.random.normal(ks[5], (zdim, c2), jnp.float32),
        "bb": 0.05 * jax.random.normal(ks[6], (c2,), jnp.float32),
    }


if __name__ == "__main__":
    key = jax.random.PRNGKey(0)
    k_x, k_z, k_p = jax.random.split(key, 3)

    N, C1, C2, H, W, ZDIM = 2, 4, 8, 16, 16, 128
    x = jax.random.normal(k_x, (N, C1, H, W), jnp.float32)   # NCHW image input
    z = jax.random.normal(k_z, (N, ZDIM), jnp.float32)       # FiLM conditioning vector
    params = make_params(k_p, C1, C2, ZDIM)

    out = jax.block_until_ready(film_conv_forward(x, z, params))
    ref = jax.block_until_ready(film_conv_ref(x, z, params))

    assert out.shape == (N, C2, H, W), out.shape
    max_err = float(jnp.max(jnp.abs(out - ref)))
    assert jnp.allclose(out, ref, atol=1e-3, rtol=1e-3), max_err
    print("KERNEL_OK")
</pallas_src>

<mosaic_0001>
module attributes {stable_mosaic.version = 11 : i64} {
  func.func @film_conv_kernel(%arg0: memref<32x64xf32, #tpu.memory_space<vmem>>, %arg1: memref<2x128xf32, #tpu.memory_space<vmem>>, %arg2: memref<64x128xf32, #tpu.memory_space<vmem>>, %arg3: memref<128x16xf32, #tpu.memory_space<vmem>>, %arg4: memref<1x16xf32, #tpu.memory_space<vmem>>, %arg5: memref<2x8xf32, #tpu.memory_space<vmem>>, %arg6: memref<128x8xf32, #tpu.memory_space<vmem>>, %arg7: memref<8x128xf32, #tpu.memory_space<vmem>>, %arg8: memref<2x16x128xf32, #tpu.memory_space<vmem>>) attributes {dimension_semantics = [], scalar_prefetch = 0 : i64, scratch_operands = 0 : i64, tpu.core_type = #tpu.core_type<tc>} {
    %c0 = arith.constant 0 : index
    %c0_0 = arith.constant 0 : index
    %0 = vector.load %arg0[%c0, %c0_0] : memref<32x64xf32, #tpu.memory_space<vmem>>, vector<32x64xf32>
    %c0_1 = arith.constant 0 : index
    %c0_2 = arith.constant 0 : index
    %1 = vector.load %arg2[%c0_1, %c0_2] : memref<64x128xf32, #tpu.memory_space<vmem>>, vector<64x128xf32>
    %cst = arith.constant dense<0.000000e+00> : vector<32x128xf32>
    %2 = tpu.matmul %0, %1, %cst {dimension_numbers = #tpu.dot_dimension_numbers<[1], [0], [0], [1], [0, 0, 1, 1], [], []>} : vector<32x64xf32>, vector<64x128xf32>, vector<32x128xf32> -> vector<32x128xf32>
    %cst_3 = arith.constant dense<0.000000e+00> : vector<128xf32>
    %3 = vector.multi_reduction <add>, %2, %cst_3 [0] : vector<32x128xf32> to vector<128xf32>
    %4 = vector.shape_cast %3 : vector<128xf32> to vector<1x128xf32>
    %5 = arith.mulf %2, %2 : vector<32x128xf32>
    %cst_4 = arith.constant dense<0.000000e+00> : vector<128xf32>
    %6 = vector.multi_reduction <add>, %5, %cst_4 [0] : vector<32x128xf32> to vector<128xf32>
    %7 = vector.shape_cast %6 : vector<128xf32> to vector<1x128xf32>
    %8 = tpu.concatenate %4, %7 in 0 : vector<1x128xf32>, vector<1x128xf32> -> vector<2x128xf32>
    %c0_5 = arith.constant 0 : index
    %c0_6 = arith.constant 0 : index
    %9 = vector.load %arg6[%c0_5, %c0_6] : memref<128x8xf32, #tpu.memory_space<vmem>>, vector<128x8xf32>
    %cst_7 = arith.constant dense<0.000000e+00> : vector<2x8xf32>
    %10 = tpu.matmul %8, %9, %cst_7 {dimension_numbers = #tpu.dot_dimension_numbers<[1], [0], [0], [1], [0, 0, 1, 1], [], []>} : vector<2x128xf32>, vector<128x8xf32>, vector<2x8xf32> -> vector<2x8xf32>
    %11 = vector.extract_strided_slice %10 {offsets = [0, 0], sizes = [1, 8], strides = [1, 1]} : vector<2x8xf32> to vector<1x8xf32>
    %cst_8 = arith.constant 0.001953125 : f32
    %12 = vector.broadcast %cst_8 : f32 to vector<1x8xf32>
    %13 = arith.mulf %11, %12 : vector<1x8xf32>
    %14 = vector.extract_strided_slice %10 {offsets = [1, 0], sizes = [1, 8], strides = [1, 1]} : vector<2x8xf32> to vector<1x8xf32>
    %cst_9 = arith.constant 0.001953125 : f32
    %15 = vector.broadcast %cst_9 : f32 to vector<1x8xf32>
    %16 = arith.mulf %14, %15 : vector<1x8xf32>
    %17 = arith.mulf %13, %13 : vector<1x8xf32>
    %18 = arith.subf %16, %17 : vector<1x8xf32>
    %cst_10 = arith.constant 9.99999974E-6 : f32
    %19 = vector.broadcast %cst_10 : f32 to vector<1x8xf32>
    %20 = arith.addf %18, %19 : vector<1x8xf32>
    %21 = math.rsqrt %20 : vector<1x8xf32>
    %c0_11 = arith.constant 0 : index
    %c0_12 = arith.constant 0 : index
    %22 = vector.load %arg5[%c0_11, %c0_12] : memref<2x8xf32, #tpu.memory_space<vmem>>, vector<1x8xf32>
    %23 = arith.mulf %22, %21 : vector<1x8xf32>
    %c1 = arith.constant 1 : index
    %c0_13 = arith.constant 0 : index
    %24 = vector.load %arg5[%c1, %c0_13] : memref<2x8xf32, #tpu.memory_space<vmem>>, vector<1x8xf32>
    %25 = arith.mulf %13, %23 : vector<1x8xf32>
    %26 = arith.subf %24, %25 : vector<1x8xf32>
    %c0_14 = arith.constant 0 : index
    %c0_15 = arith.constant 0 : index
    %27 = vector.load %arg1[%c0_14, %c0_15] : memref<2x128xf32, #tpu.memory_space<vmem>>, vector<2x128xf32>
    %c0_16 = arith.constant 0 : index
    %c0_17 = arith.constant 0 : index
    %28 = vector.load %arg3[%c0_16, %c0_17] : memref<128x16xf32, #tpu.memory_space<vmem>>, vector<128x16xf32>
    %cst_18 = arith.constant dense<0.000000e+00> : vector<2x16xf32>
    %29 = tpu.matmul %27, %28, %cst_18 {dimension_numbers = #tpu.dot_dimension_numbers<[1], [0], [0], [1], [0, 0, 1, 1], [], []>} : vector<2x128xf32>, vector<128x16xf32>, vector<2x16xf32> -> vector<2x16xf32>
    %c0_19 = arith.constant 0 : index
    %c0_20 = arith.constant 0 : index
    %30 = vector.load %arg4[%c0_19, %c0_20] : memref<1x16xf32, #tpu.memory_space<vmem>>, vector<1x16xf32>
    %31 = vector.broadcast %30 : vector<1x16xf32> to vector<2x16xf32>
    %32 = arith.addf %29, %31 : vector<2x16xf32>
    %33 = vector.extract_strided_slice %32 {offsets = [0, 0], sizes = [2, 8], strides = [1, 1]} : vector<2x16xf32> to vector<2x8xf32>
    %34 = vector.extract_strided_slice %32 {offsets = [0, 8], sizes = [2, 8], strides = [1, 1]} : vector<2x16xf32> to vector<2x8xf32>
    %35 = vector.broadcast %23 : vector<1x8xf32> to vector<2x8xf32>
    %36 = arith.mulf %33, %35 : vector<2x8xf32>
    %37 = vector.broadcast %26 : vector<1x8xf32> to vector<2x8xf32>
    %38 = arith.mulf %33, %37 : vector<2x8xf32>
    %39 = arith.addf %38, %34 : vector<2x8xf32>
    %40 = tpu.concatenate %36, %39 in 0 : vector<2x8xf32>, vector<2x8xf32> -> vector<4x8xf32>
    %c0_21 = arith.constant 0 : index
    %c0_22 = arith.constant 0 : index
    %41 = vector.load %arg7[%c0_21, %c0_22] : memref<8x128xf32, #tpu.memory_space<vmem>>, vector<8x128xf32>
    %cst_23 = arith.constant dense<0.000000e+00> : vector<4x128xf32>
    %42 = tpu.matmul %40, %41, %cst_23 {dimension_numbers = #tpu.dot_dimension_numbers<[1], [0], [0], [1], [0, 0, 1, 1], [], []>} : vector<4x8xf32>, vector<8x128xf32>, vector<4x128xf32> -> vector<4x128xf32>
    %43 = vector.extract_strided_slice %42 {offsets = [0, 0], sizes = [2, 128], strides = [1, 1]} : vector<4x128xf32> to vector<2x128xf32>
    %44 = vector.shape_cast %43 : vector<2x128xf32> to vector<2x1x128xf32>
    %45 = vector.extract_strided_slice %42 {offsets = [2, 0], sizes = [2, 128], strides = [1, 1]} : vector<4x128xf32> to vector<2x128xf32>
    %46 = vector.shape_cast %45 : vector<2x128xf32> to vector<2x1x128xf32>
    %47 = vector.shape_cast %2 : vector<32x128xf32> to vector<2x16x128xf32>
    %48 = vector.broadcast %44 : vector<2x1x128xf32> to vector<2x16x128xf32>
    %49 = arith.mulf %48, %47 : vector<2x16x128xf32>
    %50 = vector.broadcast %46 : vector<2x1x128xf32> to vector<2x16x128xf32>
    %51 = arith.addf %49, %50 : vector<2x16x128xf32>
    %cst_24 = arith.constant 0.000000e+00 : f32
    %52 = vector.broadcast %cst_24 : f32 to vector<2x16x128xf32>
    %53 = arith.cmpf ogt, %51, %52 : vector<2x16x128xf32>
    %cst_25 = arith.constant 0.000000e+00 : f32
    %54 = vector.broadcast %cst_25 : f32 to vector<2x16x128xf32>
    %55 = arith.minimumf %51, %54 : vector<2x16x128xf32>
    %56 = math.exp %55 : vector<2x16x128xf32>
    %cst_26 = arith.constant 1.000000e+00 : f32
    %57 = vector.broadcast %cst_26 : f32 to vector<2x16x128xf32>
    %58 = arith.subf %56, %57 : vector<2x16x128xf32>
    %59 = arith.select %53, %51, %58 : vector<2x16x128xi1>, vector<2x16x128xf32>
    %c0_27 = arith.constant 0 : index
    %c0_28 = arith.constant 0 : index
    %c0_29 = arith.constant 0 : index
    %60 = vector.load %arg8[%c0_27, %c0_28, %c0_29] : memref<2x16x128xf32, #tpu.memory_space<vmem>>, vector<2x16x128xf32>
    tpu.vector_store %arg8[%c0_27, %c0_28, %c0_29], %59 {strides = array<i32>} : memref<2x16x128xf32, #tpu.memory_space<vmem>>, vector<2x16x128xf32>,
    return
  }
}

</mosaic_0001>

<llo_original>
// kernel: tpu_custom_call.1
$region0: #{tpu_custom_call.1}
  #allocation0 [shape = 'u32[]', space=smem, size = 0x4, offset = 0x4, fixed_abs, tag = 'smem constant byte address 0x4 - core index']
  #allocation1 [shape = 'u32[144,128]{1,0:T(1,128)}', space=vmem, size = 0x12000, scoped, tag = 'internal scratch']
  %s0 = inlined_call_operand.vmem [shape: f32[32,64], index: 0, kind: input, shape index: {}]
  %s1 = inlined_call_operand.vmem [shape: f32[2,128], index: 1, kind: input, shape index: {}]
  %s2 = inlined_call_operand.vmem [shape: f32[64,128], index: 2, kind: input, shape index: {}]
  %s3 = inlined_call_operand.vmem [shape: f32[128,16], index: 3, kind: input, shape index: {}]
  %s4 = inlined_call_operand.vmem [shape: f32[1,16], index: 4, kind: input, shape index: {}]
  %s5 = inlined_call_operand.vmem [shape: f32[2,8], index: 5, kind: input, shape index: {}]
  %s6 = inlined_call_operand.vmem [shape: f32[128,8], index: 6, kind: input, shape index: {}]
  %s7 = inlined_call_operand.vmem [shape: f32[8,128], index: 7, kind: input, shape index: {}]
  %s8 = inlined_call_operand.hbm [shape: f32[2,16,128], index: 8, kind: output, shape index: {}]
  %s9 = sld [smem:[#allocation0]]
  $region42: #{tpu_custom_call.1} parent=0
    _
  %s11 = ssub.s32 1, %s9
  %s12 = scalar_select 0, %s11, %s9
  $region1: #{tpu_custom_call.1} parent=0
    #allocation2 [shape = 'u8[16384]{0}', space=vmem, size = 0x4000, scoped, tag = 'output window, operand 0, single buffered']
    #allocation3 [shape = 's32[1]{0}', space=sflag, size = 0x4, scoped, tag = 'scoped memory for tpu_custom_call.1']
    %13 = vsyncpa [#allocation3], 0
    // Predicated region
    $region2: #{tpu_custom_call.1} parent=1 // pred_check
      _
    $region3: #{tpu_custom_call.1} parent=1 // pred_check_branch
      %15 = sbr.rel (0) target = $region5
    $region4: #{tpu_custom_call.1} parent=1 // pred_region
      _
    $region5: #{tpu_custom_call.1} parent=1 // pred_fallthru
      _
    // Predicated region
    $region6: #{tpu_custom_call.1} parent=1 // pred_check
      _
    $region7: #{tpu_custom_call.1} parent=1 // pred_check_branch
      %17 = sbr.rel (0) target = $region9
    $region8: #{tpu_custom_call.1} parent=1 // pred_region
      _
    $region9: #{tpu_custom_call.1} parent=1 // pred_fallthru
      _
    // Predicated region
    $region10: #{tpu_custom_call.1} parent=1 // pred_check
      _
    $region11: #{tpu_custom_call.1} parent=1 // pred_check_branch
      %19 = sbr.rel (0) target = $region13
    $region12: #{tpu_custom_call.1} parent=1 // pred_region
      _
    $region13: #{tpu_custom_call.1} parent=1 // pred_fallthru
      _
    // Predicated region
    $region14: #{tpu_custom_call.1} parent=1 // pred_check
      _
    $region15: #{tpu_custom_call.1} parent=1 // pred_check_branch
      %21 = sbr.rel (0) target = $region17
    $region16: #{tpu_custom_call.1} parent=1 // pred_region
      _
    $region17: #{tpu_custom_call.1} parent=1 // pred_fallthru
      _
    // Predicated region
    $region18: #{tpu_custom_call.1} parent=1 // pred_check
      _
    $region19: #{tpu_custom_call.1} parent=1 // pred_check_branch
      %23 = sbr.rel (0) target = $region21
    $region20: #{tpu_custom_call.1} parent=1 // pred_region
      _
    $region21: #{tpu_custom_call.1} parent=1 // pred_fallthru
      _
    // Predicated region
    $region22: #{tpu_custom_call.1} parent=1 // pred_check
      _
    $region23: #{tpu_custom_call.1} parent=1 // pred_check_branch
      %25 = sbr.rel (0) target = $region25
    $region24: #{tpu_custom_call.1} parent=1 // pred_region
      _
    $region25: #{tpu_custom_call.1} parent=1 // pred_fallthru
      _
    // Predicated region
    $region26: #{tpu_custom_call.1} parent=1 // pred_check
      _
    $region27: #{tpu_custom_call.1} parent=1 // pred_check_branch
      %27 = sbr.rel (0) target = $region29
    $region28: #{tpu_custom_call.1} parent=1 // pred_region
      _
    $region29: #{tpu_custom_call.1} parent=1 // pred_fallthru
      _
    // Predicated region
    $region30: #{tpu_custom_call.1} parent=1 // pred_check
      _
    $region31: #{tpu_custom_call.1} parent=1 // pred_check_branch
      %29 = sbr.rel (0) target = $region33
    $region32: #{tpu_custom_call.1} parent=1 // pred_region
      _
    $region33: #{tpu_custom_call.1} parent=1 // pred_fallthru
      _
    %v30 = vld [vmem:[%s0] sm:$0xff]
    %v31 = vld [vmem:[%s0 + $0x8] sm:$0xff]
    %v32 = vld [vmem:[%s0 + $0x10] sm:$0xff]
    %v33 = vld [vmem:[%s0 + $0x18] sm:$0xff]
    %v34 = vld [vmem:[%s2] sm:$0xff]
    %v35 = vld [vmem:[%s2 + $0x8] sm:$0xff]
    %v36 = vld [vmem:[%s2 + $0x10] sm:$0xff]
    %v37 = vld [vmem:[%s2 + $0x18] sm:$0xff]
    %v38 = vld [vmem:[%s2 + $0x20] sm:$0xff]
    %v39 = vld [vmem:[%s2 + $0x28] sm:$0xff]
    %v40 = vld [vmem:[%s2 + $0x30] sm:$0xff]
    %v41 = vld [vmem:[%s2 + $0x38] sm:$0xff]
    %vm42 = vcmask 523264
    %v44 = vsel %vm42, %v30, 0
    %v47 = vsel %vm42, %v31, 0
    %v50 = vsel %vm42, %v32, 0
    %v53 = vsel %vm42, %v33, 0
    %55 = vmatprep.subr.mxu0 0.0
    %56 = vmatpush1.msra.mxu0 %v34
    %57 = vmatprep.subr.mxu0 0.0
    %58 = vmatpush1.msra.mxu0 %v35
    %59 = vmatprep.subr.mxu0 0.0
    %60 = vmatpush1.msra.mxu0 %v36
    %61 = vmatprep.subr.mxu0 0.0
    %62 = vmatpush1.msra.mxu0 %v37
    %63 = vmatprep.subr.mxu0 0.0
    %64 = vmatpush1.msra.mxu0 %v38
    %65 = vmatprep.subr.mxu0 0.0
    %66 = vmatpush1.msra.mxu0 %v39
    %67 = vmatprep.subr.mxu0 0.0
    %68 = vmatpush1.msra.mxu0 %v40
    %69 = vmatprep.subr.mxu0 0.0
    %70 = vmatpush1.msra.mxu0 %v41
    %71 = vmatprep.subr.mxu0 0.0
    %72 = vmatpush1.msra.mxu0 0.0
    %73 = vmatprep.subr.mxu0 0.0
    %74 = vmatpush1.msra.mxu0 0.0
    %75 = vmatprep.subr.mxu0 0.0
    %76 = vmatpush1.msra.mxu0 0.0
    %77 = vmatprep.subr.mxu0 0.0
    %78 = vmatpush1.msra.mxu0 0.0
    %79 = vmatprep.subr.mxu0 0.0
    %80 = vmatpush1.msra.mxu0 0.0
    %81 = vmatprep.subr.mxu0 0.0
    %82 = vmatpush1.msra.mxu0 0.0
    %83 = vmatprep.subr.mxu0 0.0
    %84 = vmatpush1.msra.mxu0 0.0
    %85 = vmatprep.subr.mxu0 0.0
    %86 = vmatpush1.msra.mxu0 0.0
    %87 = vmatprep.subr.mxu0 0.0
    %88 = vmatpush1.msra.mxu0 0.0
    %89 = vmatprep.subr.mxu0 0.0
    %90 = vmatpush1.msra.mxu0 0.0
    %91 = vmatprep.subr.mxu0 0.0
    %92 = vmatpush1.msra.mxu0 0.0
    %93 = vmatprep.subr.mxu0 0.0
    %94 = vmatpush1.msra.mxu0 0.0
    %95 = vmatprep.subr.mxu0 0.0
    %96 = vmatpush1.msra.mxu0 0.0
    %97 = vmatprep.subr.mxu0 0.0
    %98 = vmatpush1.msra.mxu0 0.0
    %99 = vmatprep.subr.mxu0 0.0
    %100 = vmatpush1.msra.mxu0 0.0
    %101 = vmatprep.subr.mxu0 0.0
    %102 = vmatpush1.msra.mxu0 0.0
    %103 = vmatprep.subr.mxu0 0.0
    %104 = vmatpush1.msra.mxu0 0.0
    %105 = vmatprep.subr.mxu0 0.0
    %106 = vmatpush1.msra.mxu0 0.0
    %107 = vmatprep.subr.mxu0 0.0
    %108 = vmatpush1.msra.mxu0 0.0
    %109 = vmatprep.subr.mxu0 0.0
    %110 = vmatpush1.msra.mxu0 0.0
    %111 = vmatprep.subr.mxu0 0.0
    %112 = vmatpush1.msra.mxu0 0.0
    %113 = vmatprep.subr.mxu0 0.0
    %114 = vmatpush1.msra.mxu0 0.0
    %115 = vmatprep.subr.mxu0 0.0
    %116 = vmatpush1.msra.mxu0 0.0
    %117 = vmatprep.subr.mxu0 0.0
    %118 = vmatpush1.msra.mxu0 0.0
    %119 = vmatprep.mubr.f32.mxu0 0.0
    %120 = vmatmul.mubr.f32.gmra.mrb[0].mxu0 %v44
    %v121 = vpop.f32.mrb[0].mxu0
    %v122 = vadd.f32 0.0, %v121
    %v123 = vpop.f32.mrb[0].mxu0
    %124 = vmatprep.mubr.f32.mxu0 0.0
    %125 = vmatmul.mubr.f32.gmra.mrb[0].mxu0 %v47
    %v126 = vpop.f32.mrb[0].mxu0
    %v127 = vadd.f32 0.0, %v126
    %v128 = vpop.f32.mrb[0].mxu0
    %129 = vmatprep.mubr.f32.mxu0 0.0
    %130 = vmatmul.mubr.f32.gmra.mrb[0].mxu0 %v50
    %v131 = vpop.f32.mrb[0].mxu0
    %v132 = vadd.f32 0.0, %v131
    %v133 = vpop.f32.mrb[0].mxu0
    %134 = vmatprep.mubr.f32.mxu0 0.0
    %135 = vmatmul.mubr.f32.gmra.mrb[0].mxu0 %v53
    %v136 = vpop.f32.mrb[0].mxu0
    %v137 = vadd.f32 0.0, %v136
    %v138 = vpop.f32.mrb[0].mxu0
    %139 = vdwg.mxu0
    %v140 = vadd.f32 %v122, %v127
    %v141 = vadd.f32 %v140, %v132
    %v142 = vadd.f32 %v141, %v137
    %v143 = vrot.slane %v142, 4
    %v144 = vadd.f32 %v142, %v143
    %v145 = vrot.slane %v144, 2
    %v146 = vadd.f32 %v144, %v145
    %v147 = vrot.slane %v146, 1
    %v148 = vadd.f32 %v146, %v147
    %v149 = vmul.f32 %v122, %v122
    %v150 = vmul.f32 %v127, %v127
    %v151 = vmul.f32 %v132, %v132
    %v152 = vmul.f32 %v137, %v137
    %v153 = vadd.f32 %v149, %v150
    %v154 = vadd.f32 %v153, %v151
    %v155 = vadd.f32 %v154, %v152
    %v156 = vrot.slane %v155, 4
    %v157 = vadd.f32 %v155, %v156
    %v158 = vrot.slane %v157, 2
    %v159 = vadd.f32 %v157, %v158
    %v160 = vrot.slane %v159, 1
    %v161 = vadd.f32 %v159, %v160
    %vm162 = vcmask 1040384
    %v163 = vsel %vm162, %v148, %v161
    %v164 = vld [vmem:[%s6] sm:$0xff]
    %v165 = vld [vmem:[%s6 + $0x8] sm:$0xff]
    %v166 = vld [vmem:[%s6 + $0x10] sm:$0xff]
    %v167 = vld [vmem:[%s6 + $0x18] sm:$0xff]
    %v168 = vld [vmem:[%s6 + $0x20] sm:$0xff]
    %v169 = vld [vmem:[%s6 + $0x28] sm:$0xff]
    %v170 = vld [vmem:[%s6 + $0x30] sm:$0xff]
    %v171 = vld [vmem:[%s6 + $0x38] sm:$0xff]
    %v172 = vld [vmem:[%s6 + $0x40] sm:$0xff]
    %v173 = vld [vmem:[%s6 + $0x48] sm:$0xff]
    %v174 = vld [vmem:[%s6 + $0x50] sm:$0xff]
    %v175 = vld [vmem:[%s6 + $0x58] sm:$0xff]
    %v176 = vld [vmem:[%s6 + $0x60] sm:$0xff]
    %v177 = vld [vmem:[%s6 + $0x68] sm:$0xff]
    %v178 = vld [vmem:[%s6 + $0x70] sm:$0xff]
    %v179 = vld [vmem:[%s6 + $0x78] sm:$0xff]
    %180 = vmatprep.subr.mxu0 0.0
    %181 = vmatpush1.msra.mxu0 %v164
    %182 = vmatprep.subr.mxu0 0.0
    %183 = vmatpush1.msra.mxu0 %v165
    %184 = vmatprep.subr.mxu0 0.0
    %185 = vmatpush1.msra.mxu0 %v166
    %186 = vmatprep.subr.mxu0 0.0
    %187 = vmatpush1.msra.mxu0 %v167
    %188 = vmatprep.subr.mxu0 0.0
    %189 = vmatpush1.msra.mxu0 %v168
    %190 = vmatprep.subr.mxu0 0.0
    %191 = vmatpush1.msra.mxu0 %v169
    %192 = vmatprep.subr.mxu0 0.0
    %193 = vmatpush1.msra.mxu0 %v170
    %194 = vmatprep.subr.mxu0 0.0
    %195 = vmatpush1.msra.mxu0 %v171
    %196 = vmatprep.subr.mxu0 0.0
    %197 = vmatpush1.msra.mxu0 %v172
    %198 = vmatprep.subr.mxu0 0.0
    %199 = vmatpush1.msra.mxu0 %v173
    %200 = vmatprep.subr.mxu0 0.0
    %201 = vmatpush1.msra.mxu0 %v174
    %202 = vmatprep.subr.mxu0 0.0
    %203 = vmatpush1.msra.mxu0 %v175
    %204 = vmatprep.subr.mxu0 0.0
    %205 = vmatpush1.msra.mxu0 %v176
    %206 = vmatprep.subr.mxu0 0.0
    %207 = vmatpush1.msra.mxu0 %v177
    %208 = vmatprep.subr.mxu0 0.0
    %209 = vmatpush1.msra.mxu0 %v178
    %210 = vmatprep.subr.mxu0 0.0
    %211 = vmatpush1.msra.mxu0 %v179
    %212 = vmatprep.subr.mxu0 0.0
    %213 = vmatpush1.msra.mxu0 0.0
    %214 = vmatprep.subr.mxu0 0.0
    %215 = vmatpush1.msra.mxu0 0.0
    %216 = vmatprep.subr.mxu0 0.0
    %217 = vmatpush1.msra.mxu0 0.0
    %218 = vmatprep.subr.mxu0 0.0
    %219 = vmatpush1.msra.mxu0 0.0
    %220 = vmatprep.subr.mxu0 0.0
    %221 = vmatpush1.msra.mxu0 0.0
    %222 = vmatprep.subr.mxu0 0.0
    %223 = vmatpush1.msra.mxu0 0.0
    %224 = vmatprep.subr.mxu0 0.0
    %225 = vmatpush1.msra.mxu0 0.0
    %226 = vmatprep.subr.mxu0 0.0
    %227 = vmatpush1.msra.mxu0 0.0
    %228 = vmatprep.subr.mxu0 0.0
    %229 = vmatpush1.msra.mxu0 0.0
    %230 = vmatprep.subr.mxu0 0.0
    %231 = vmatpush1.msra.mxu0 0.0
    %232 = vmatprep.subr.mxu0 0.0
    %233 = vmatpush1.msra.mxu0 0.0
    %234 = vmatprep.subr.mxu0 0.0
    %235 = vmatpush1.msra.mxu0 0.0
    %236 = vmatprep.subr.mxu0 0.0
    %237 = vmatpush1.msra.mxu0 0.0
    %238 = vmatprep.subr.mxu0 0.0
    %239 = vmatpush1.msra.mxu0 0.0
    %240 = vmatprep.subr.mxu0 0.0
    %241 = vmatpush1.msra.mxu0 0.0
    %242 = vmatprep.subr.mxu0 0.0
    %243 = vmatpush1.msra.mxu0 0.0
    %244 = vmatprep.mubr.f32.mxu0 0.0
    %245 = vmatmul.mubr.f32.gmra.mrb[0].mxu0 %v163
    %v246 = vpop.f32.mrb[0].mxu0
    %v247 = vadd.f32 0.0, %v246
    %v248 = vpop.f32.mrb[0].mxu0
    %249 = vdwg.mxu0
    %v250 = vmul.f32 %v247, 0.001953125
    %v251 = vmul.f32 %v250, %v250
    %v253 = vrot.slane %v251, 7
    %v255 = vsub.f32 %v250, %v253
    %v256 = vadd.f32 %v255, 1e-05
    %v257 = vrsqrt.pop %v256
    %v258 = vld [vmem:[%s5] sm:$0x1]
    %v260 = vrot.slane %v257, 1
    %v262 = vmul.f32 %v258, %v260
    %v263 = vld [vmem:[%s5 + $0x1] sm:$0x1]
    %v264 = vmul.f32 %v250, %v262
    %v265 = vsub.f32 %v263, %v264
    %v266 = vld [vmem:[%s1] sm:$0x3]
    %v267 = vld [vmem:[%s3] sm:$0xff]
    %v268 = vld [vmem:[%s3 + $0x8] sm:$0xff]
    %v269 = vld [vmem:[%s3 + $0x10] sm:$0xff]
    %v270 = vld [vmem:[%s3 + $0x18] sm:$0xff]
    %v271 = vld [vmem:[%s3 + $0x20] sm:$0xff]
    %v272 = vld [vmem:[%s3 + $0x28] sm:$0xff]
    %v273 = vld [vmem:[%s3 + $0x30] sm:$0xff]
    %v274 = vld [vmem:[%s3 + $0x38] sm:$0xff]
    %v275 = vld [vmem:[%s3 + $0x40] sm:$0xff]
    %v276 = vld [vmem:[%s3 + $0x48] sm:$0xff]
    %v277 = vld [vmem:[%s3 + $0x50] sm:$0xff]
    %v278 = vld [vmem:[%s3 + $0x58] sm:$0xff]
    %v279 = vld [vmem:[%s3 + $0x60] sm:$0xff]
    %v280 = vld [vmem:[%s3 + $0x68] sm:$0xff]
    %v281 = vld [vmem:[%s3 + $0x70] sm:$0xff]
    %v282 = vld [vmem:[%s3 + $0x78] sm:$0xff]
    %v283 = vld [vmem:[%s4] sm:$0x1]
    %v285 = vlaneseq
    %v286 = vshrl.u32 %v285, 7
    %v287 = vsub.s32 0, %v286
    %v288 = vrot.slane %v283, %v287
    %290 = vmatprep.subr.mxu0 0.0
    %291 = vmatpush1.msra.mxu0 %v267
    %292 = vmatprep.subr.mxu0 0.0
    %293 = vmatpush1.msra.mxu0 %v268
    %294 = vmatprep.subr.mxu0 0.0
    %295 = vmatpush1.msra.mxu0 %v269
    %296 = vmatprep.subr.mxu0 0.0
    %297 = vmatpush1.msra.mxu0 %v270
    %298 = vmatprep.subr.mxu0 0.0
    %299 = vmatpush1.msra.mxu0 %v271
    %300 = vmatprep.subr.mxu0 0.0
    %301 = vmatpush1.msra.mxu0 %v272
    %302 = vmatprep.subr.mxu0 0.0
    %303 = vmatpush1.msra.mxu0 %v273
    %304 = vmatprep.subr.mxu0 0.0
    %305 = vmatpush1.msra.mxu0 %v274
    %306 = vmatprep.subr.mxu0 0.0
    %307 = vmatpush1.msra.mxu0 %v275
    %308 = vmatprep.subr.mxu0 0.0
    %309 = vmatpush1.msra.mxu0 %v276
    %310 = vmatprep.subr.mxu0 0.0
    %311 = vmatpush1.msra.mxu0 %v277
    %312 = vmatprep.subr.mxu0 0.0
    %313 = vmatpush1.msra.mxu0 %v278
    %314 = vmatprep.subr.mxu0 0.0
    %315 = vmatpush1.msra.mxu0 %v279
    %316 = vmatprep.subr.mxu0 0.0
    %317 = vmatpush1.msra.mxu0 %v280
    %318 = vmatprep.subr.mxu0 0.0
    %319 = vmatpush1.msra.mxu0 %v281
    %320 = vmatprep.subr.mxu0 0.0
    %321 = vmatpush1.msra.mxu0 %v282
    %322 = vmatprep.subr.mxu0 0.0
    %323 = vmatpush1.msra.mxu0 0.0
    %324 = vmatprep.subr.mxu0 0.0
    %325 = vmatpush1.msra.mxu0 0.0
    %326 = vmatprep.subr.mxu0 0.0
    %327 = vmatpush1.msra.mxu0 0.0
    %328 = vmatprep.subr.mxu0 0.0
    %329 = vmatpush1.msra.mxu0 0.0
    %330 = vmatprep.subr.mxu0 0.0
    %331 = vmatpush1.msra.mxu0 0.0
    %332 = vmatprep.subr.mxu0 0.0
    %333 = vmatpush1.msra.mxu0 0.0
    %334 = vmatprep.subr.mxu0 0.0
    %335 = vmatpush1.msra.mxu0 0.0
    %336 = vmatprep.subr.mxu0 0.0
    %337 = vmatpush1.msra.mxu0 0.0
    %338 = vmatprep.subr.mxu0 0.0
    %339 = vmatpush1.msra.mxu0 0.0
    %340 = vmatprep.subr.mxu0 0.0
    %341 = vmatpush1.msra.mxu0 0.0
    %342 = vmatprep.subr.mxu0 0.0
    %343 = vmatpush1.msra.mxu0 0.0
    %344 = vmatprep.subr.mxu0 0.0
    %345 = vmatpush1.msra.mxu0 0.0
    %346 = vmatprep.subr.mxu0 0.0
    %347 = vmatpush1.msra.mxu0 0.0
    %348 = vmatprep.subr.mxu0 0.0
    %349 = vmatpush1.msra.mxu0 0.0
    %350 = vmatprep.subr.mxu0 0.0
    %351 = vmatpush1.msra.mxu0 0.0
    %352 = vmatprep.subr.mxu0 0.0
    %353 = vmatpush1.msra.mxu0 0.0
    %354 = vmatprep.mubr.f32.mxu0 0.0
    %355 = vmatmul.mubr.f32.gmra.mrb[0].mxu0 %v266
    %v356 = vpop.f32.mrb[0].mxu0
    %v357 = vadd.f32 %v288, %v356
    %v358 = vpop.f32.mrb[0].mxu0
    %359 = vdwg.mxu0
    %v360 = vlaneseq
    %v361 = vshrl.u32 %v360, 7
    %v362 = vsub.s32 0, %v361
    %v363 = vrot.slane %v262, %v362
    %v364 = vmul.f32 %v357, %v363
    %v365 = vlaneseq
    %v366 = vshrl.u32 %v365, 7
    %v367 = vsub.s32 0, %v366
    %v368 = vrot.slane %v265, %v367
    %v369 = vmul.f32 %v357, %v368
    %371 = vrot.lane.b32.xlu0 %v357, 120
    %v372 = vpop.permute.xlu0 %371
    %v374 = vadd.f32 %v369, %v372
    %v376 = vrot.slane %v374, 6
    %vm378 = vcmask 1041408
    %v379 = vsel %vm378, %v364, %v376
    %v380 = vld [vmem:[%s7] sm:$0xff]
    %vm381 = vcmask 64512
    %v383 = vsel %vm381, %v379, 0
    %385 = vmatprep.subr.mxu0 0.0
    %386 = vmatpush1.msra.mxu0 %v380
    %387 = vmatprep.subr.mxu0 0.0
    %388 = vmatpush1.msra.mxu0 0.0
    %389 = vmatprep.subr.mxu0 0.0
    %390 = vmatpush1.msra.mxu0 0.0
    %391 = vmatprep.subr.mxu0 0.0
    %392 = vmatpush1.msra.mxu0 0.0
    %393 = vmatprep.subr.mxu0 0.0
    %394 = vmatpush1.msra.mxu0 0.0
    %395 = vmatprep.subr.mxu0 0.0
    %396 = vmatpush1.msra.mxu0 0.0
    %397 = vmatprep.subr.mxu0 0.0
    %398 = vmatpush1.msra.mxu0 0.0
    %399 = vmatprep.subr.mxu0 0.0
    %400 = vmatpush1.msra.mxu0 0.0
    %401 = vmatprep.subr.mxu0 0.0
    %402 = vmatpush1.msra.mxu0 0.0
    %403 = vmatprep.subr.mxu0 0.0
    %404 = vmatpush1.msra.mxu0 0.0
    %405 = vmatprep.subr.mxu0 0.0
    %406 = vmatpush1.msra.mxu0 0.0
    %407 = vmatprep.subr.mxu0 0.0
    %408 = vmatpush1.msra.mxu0 0.0
    %409 = vmatprep.subr.mxu0 0.0
    %410 = vmatpush1.msra.mxu0 0.0
    %411 = vmatprep.subr.mxu0 0.0
    %412 = vmatpush1.msra.mxu0 0.0
    %413 = vmatprep.subr.mxu0 0.0
    %414 = vmatpush1.msra.mxu0 0.0
    %415 = vmatprep.subr.mxu0 0.0
    %416 = vmatpush1.msra.mxu0 0.0
    %417 = vmatprep.subr.mxu0 0.0
    %418 = vmatpush1.msra.mxu0 0.0
    %419 = vmatprep.subr.mxu0 0.0
    %420 = vmatpush1.msra.mxu0 0.0
    %421 = vmatprep.subr.mxu0 0.0
    %422 = vmatpush1.msra.mxu0 0.0
    %423 = vmatprep.subr.mxu0 0.0
    %424 = vmatpush1.msra.mxu0 0.0
    %425 = vmatprep.subr.mxu0 0.0
    %426 = vmatpush1.msra.mxu0 0.0
    %427 = vmatprep.subr.mxu0 0.0
    %428 = vmatpush1.msra.mxu0 0.0
    %429 = vmatprep.subr.mxu0 0.0
    %430 = vmatpush1.msra.mxu0 0.0
    %431 = vmatprep.subr.mxu0 0.0
    %432 = vmatpush1.msra.mxu0 0.0
    %433 = vmatprep.subr.mxu0 0.0
    %434 = vmatpush1.msra.mxu0 0.0
    %435 = vmatprep.subr.mxu0 0.0
    %436 = vmatpush1.msra.mxu0 0.0
    %437 = vmatprep.subr.mxu0 0.0
    %438 = vmatpush1.msra.mxu0 0.0
    %439 = vmatprep.subr.mxu0 0.0
    %440 = vmatpush1.msra.mxu0 0.0
    %441 = vmatprep.subr.mxu0 0.0
    %442 = vmatpush1.msra.mxu0 0.0
    %443 = vmatprep.subr.mxu0 0.0
    %444 = vmatpush1.msra.mxu0 0.0
    %445 = vmatprep.subr.mxu0 0.0
    %446 = vmatpush1.msra.mxu0 0.0
    %447 = vmatprep.subr.mxu0 0.0
    %448 = vmatpush1.msra.mxu0 0.0
    %449 = vmatprep.mubr.f32.mxu0 0.0
    %450 = vmatmul.mubr.f32.gmra.mrb[0].mxu0 %v383
    %v451 = vpop.f32.mrb[0].mxu0
    %v452 = vadd.f32 0.0, %v451
    %v453 = vpop.f32.mrb[0].mxu0
    %454 = vdwg.mxu0
    %v457 = vunpack.c.l.s4 1966171168
    %v458 = vunpack.c.0.s8 %v457
    %v459 = vlaneseq
    %v460 = vshrl.u32 %v459, 7
    %v461 = vsub.s32 %v458, %v460
    %v462 = vrot.slane %v452, %v461
    %v463 = vcombine.high %v462, %v462
    %v465 = vunpack.c.l.s4 1966171168
    %v466 = vunpack.c.0.s8 %v465
    %v467 = vlaneseq
    %v468 = vshrl.u32 %v467, 7
    %v469 = vsub.s32 %v466, %v468
    %v470 = vrot.slane %v462, %v469
    %v472 = vunpack.c.l.s4 1966171168
    %v473 = vunpack.c.0.s8 %v472
    %v474 = vlaneseq
    %v475 = vshrl.u32 %v474, 7
    %v476 = vsub.s32 %v473, %v475
    %v477 = vrot.slane %v463, %v476
    %v478 = vcombine.high %v470, %v470
    %v479 = vcombine.high %v477, %v477
    %v480 = vlaneseq
    %v481 = vshrl.u32 %v480, 7
    %v482 = vsub.s32 0, %v481
    %v483 = vrot.slane %v470, %v482
    %v484 = vlaneseq
    %v485 = vshrl.u32 %v484, 7
    %v486 = vsub.s32 0, %v485
    %v487 = vrot.slane %v477, %v486
    %v490 = vmul.f32 %v483, %v122
    %v491 = vmul.f32 %v483, %v127
    %v492 = vmul.f32 %v487, %v132
    %v493 = vmul.f32 %v487, %v137
    %v494 = vlaneseq
    %v495 = vshrl.u32 %v494, 7
    %v496 = vsub.s32 0, %v495
    %v497 = vrot.slane %v478, %v496
    %v498 = vlaneseq
    %v499 = vshrl.u32 %v498, 7
    %v500 = vsub.s32 0, %v499
    %v501 = vrot.slane %v479, %v500
    %v504 = vadd.f32 %v490, %v497
    %v505 = vadd.f32 %v491, %v497
    %v506 = vadd.f32 %v492, %v501
    %v507 = vadd.f32 %v493, %v501
    %vm508 = vcmp.gt.f32.partialorder %v504, 0.0
    %vm509 = vcmp.gt.f32.partialorder %v505, 0.0
    %vm510 = vcmp.gt.f32.partialorder %v506, 0.0
    %vm511 = vcmp.gt.f32.partialorder %v507, 0.0
    %v512 = vmin.f32 %v504, 0.0
    %v513 = vmin.f32 %v505, 0.0
    %v514 = vmin.f32 %v506, 0.0
    %v515 = vmin.f32 %v507, 0.0
    %v516 = vmul.f32 %v512, 1.442695
    %v517 = vpow.pop %v516
    %v518 = vmul.f32 %v513, 1.442695
    %v519 = vpow.pop %v518
    %v520 = vmul.f32 %v514, 1.442695
    %v521 = vpow.pop %v520
    %v522 = vmul.f32 %v515, 1.442695
    %v523 = vpow.pop %v522
    %v524 = vsub.f32 %v517, 1.0
    %v525 = vsub.f32 %v519, 1.0
    %v526 = vsub.f32 %v521, 1.0
    %v527 = vsub.f32 %v523, 1.0
    %v528 = vsel %vm508, %v504, %v524
    %v529 = vsel %vm509, %v505, %v525
    %v530 = vsel %vm510, %v506, %v526
    %v531 = vsel %vm511, %v507, %v527
    %532 = vst [vmem:[#allocation2] sm:$0xff] %v528
    %533 = vst [vmem:[#allocation2 + $0x8] sm:$0xff] %v529
    %534 = vst [vmem:[#allocation2 + $0x10] sm:$0xff] %v530
    %535 = vst [vmem:[#allocation2 + $0x18] sm:$0xff] %v531
    // Predicated region
    $region34: #{tpu_custom_call.1} parent=1 // pred_check
      _
    $region35: #{tpu_custom_call.1} parent=1 // pred_check_branch
      %537 = sbr.rel (0) target = $region37
    $region36: #{tpu_custom_call.1} parent=1 // pred_region
      %s539 = ssub.s32 512, 512
      %540 = vsyncadd [#allocation3], %s539
      %s541 = sshll.u32 [#allocation2], 4
      %s542 = int_to_ptr.vmem [resolvable:$true] %s541
      %547 = dma.vmem_to_hbm [thread:$0]  %s542, 512, %s8, [#allocation3], 128, 128, 8
    $region37: #{tpu_custom_call.1} parent=1 // pred_fallthru
      _
    // Predicated region
    $region38: #{tpu_custom_call.1} parent=1 // pred_check
      _
    $region39: #{tpu_custom_call.1} parent=1 // pred_check_branch
      %549 = sbr.rel (0) target = $region41
    $region40: #{tpu_custom_call.1} parent=1 // pred_region
      %550 = dma.done [#allocation3], 512
    $region41: #{tpu_custom_call.1} parent=1 // pred_fallthru
      _
    %551 = vsyncpa [#allocation3], 1

</llo_original>
